<compile_context>
chip_gen: v7x
topology: tpu7x:2x2x1
jax: 0.10.0
libtpu: 0.0.40
codegen_flags: <defaults>
</compile_context>

<pallas_src>
import jax
import jax.numpy as jnp
from jax.experimental import pallas as pl
from jax.experimental.pallas import tpu as pltpu


def cnet_kernel(xT_ref, w1T_ref, b1_ref, w2_ref, b2_ref, oT_ref):
    # xT: (4, TB)   w1T: (64, 4)   b1: (64, 1)   w2: (64, 1)   b2: (1, 1) in SMEM
    # oT: (1, TB)  -- lane-dense output block
    xT = xT_ref[...]
    w1T = w1T_ref[...]

    # Layer 1: K=4 contraction as 4 rank-1 VPU multiply-adds (MXU would be <2% utilized).
    acc = w1T[:, 0:1] * xT[0:1, :]
    for k in range(1, 4):                       # static unroll
        acc = acc + w1T[:, k:k + 1] * xT[k:k + 1, :]
    h = jnp.maximum(acc + b1_ref[...], 0.0)     # (64, TB), bias broadcast + ReLU (VPU)

    # Layer 2: N=1 output -> VPU multiply + sublane (XLU) reduction over 64 features.
    oT = jnp.sum(w2_ref[...] * h, axis=0, keepdims=True)       # (1, TB)
    oT_ref[...] = (oT + b2_ref[0, 0]).astype(oT_ref.dtype)      # scalar bias from SMEM


def cnet_forward(x, w1, b1, w2, b2, *, tile_b=512):
    # Mirror PyTorch: x = x.view(x.size(0), -1); self.fc(x)
    x2d = x.reshape(x.shape[0], -1).astype(jnp.float32)
    B, F = x2d.shape
    assert F == 4 and w1.shape == (4, 64) and w2.shape == (64, 1)

    # One-time wrapper-side layout plumbing: batch -> lane axis, weights transposed.
    xT = x2d.T                                        # (4, B)
    w1T = w1.T.astype(jnp.float32)                    # (64, 4)  (out, in)
    b1c = b1.reshape(64, 1).astype(jnp.float32)       # (64, 1)
    w2c = w2.reshape(64, 1).astype(jnp.float32)       # (64, 1)
    b2s = b2.reshape(1, 1).astype(jnp.float32)        # (1, 1)  -> SMEM scalar

    # Lane-aligned batch tile: multiple of 128, capped at tile_b. Small batches pad
    # to a single 128-wide tile; large batches pipeline through a parallel grid.
    TB = min(int(tile_b), pl.cdiv(B, 128) * 128)
    B_pad = pl.cdiv(B, TB) * TB
    if B_pad != B:
        xT = jnp.pad(xT, ((0, 0), (0, B_pad - B)))
    grid = (B_pad // TB,)

    oT = pl.pallas_call(
        cnet_kernel,
        out_shape=jax.ShapeDtypeStruct((1, B_pad), jnp.float32),
        grid=grid,
        in_specs=[
            pl.BlockSpec((4, TB), lambda i: (0, i)),       # xT batch tile
            pl.BlockSpec((64, 4), lambda i: (0, 0)),       # w1T (whole, resident)
            pl.BlockSpec((64, 1), lambda i: (0, 0)),       # b1 column
            pl.BlockSpec((64, 1), lambda i: (0, 0)),       # w2 column
            pl.BlockSpec(memory_space=pltpu.MemorySpace.SMEM),  # b2 scalar
        ],
        out_specs=pl.BlockSpec((1, TB), lambda i: (0, i)),  # lane-dense output
        compiler_params=pltpu.CompilerParams(
            dimension_semantics=("parallel",),              # shards across TCs on v7x
        ),
    )(xT, w1T, b1c, w2c, b2s)

    return oT[:, :B].T  # (B, 1)


def init_params(key):
    # Deterministic synthetic init. (The PyTorch init loop's condition never fires,
    # so structure — not exact init values — defines forward semantics.)
    # TODO(synk): port real PyTorch kaiming-uniform defaults if bitwise parity is needed.
    k1, k2 = jax.random.split(key)
    w1 = jax.random.normal(k1, (4, 64), jnp.float32) * 0.01
    b1 = jnp.full((1, 64), 0.1, jnp.float32)
    w2 = jax.random.normal(k2, (64, 1), jnp.float32) * 0.01
    b2 = jnp.full((1, 1), 0.1, jnp.float32)
    return w1, b1, w2, b2


if __name__ == "__main__":
    key = jax.random.PRNGKey(0)
    kx, kp = jax.random.split(key)
    w1, b1, w2, b2 = init_params(kp)

    # Small CartPole-style batch (8 states x 4 features).
    x = jax.random.normal(kx, (8, 4), jnp.float32)
    out = cnet_forward(x, w1, b1, w2, b2)
    jax.block_until_ready(out)
    ref = jnp.maximum(x @ w1 + b1, 0.0) @ w2 + b2
    assert out.shape == (8, 1)
    assert jnp.allclose(out, ref, atol=1e-5, rtol=1e-5)

    # Exercise the multi-step parallel grid + padding path with a ragged batch.
    xb = jax.random.normal(jax.random.PRNGKey(1), (1000, 4), jnp.float32)
    outb = cnet_forward(xb, w1, b1, w2, b2)
    jax.block_until_ready(outb)
    refb = jnp.maximum(xb @ w1 + b1, 0.0) @ w2 + b2
    assert outb.shape == (1000, 1)
    assert jnp.allclose(outb, refb, atol=1e-5, rtol=1e-5)

    print("KERNEL_OK")
</pallas_src>

<mosaic_0001>
module attributes {stable_mosaic.version = 11 : i64} {
  func.func @cnet_kernel(%arg0: i32, %arg1: memref<4x128xf32, #tpu.memory_space<vmem>>, %arg2: memref<64x4xf32, #tpu.memory_space<vmem>>, %arg3: memref<64x1xf32, #tpu.memory_space<vmem>>, %arg4: memref<64x1xf32, #tpu.memory_space<vmem>>, %arg5: memref<1x1xf32, #tpu.memory_space<smem>>, %arg6: memref<1x128xf32, #tpu.memory_space<vmem>>) attributes {dimension_semantics = [#tpu.dimension_semantics<parallel>], iteration_bounds = array<i64: 1>, scalar_prefetch = 0 : i64, scratch_operands = 0 : i64, tpu.core_type = #tpu.core_type<tc>, window_params = [{transform_indices = @transform_0, window_bounds = array<i64: 4, 128>}, {pipeline_mode = #tpu.pipeline_mode<synchronous>, transform_indices = @transform_1, window_bounds = array<i64: 64, 4>}, {pipeline_mode = #tpu.pipeline_mode<synchronous>, transform_indices = @transform_2, window_bounds = array<i64: 64, 1>}, {pipeline_mode = #tpu.pipeline_mode<synchronous>, transform_indices = @transform_3, window_bounds = array<i64: 64, 1>}, {transform_indices = @transform_4, window_bounds = array<i64: 1, 1>}, {transform_indices = @transform_5, window_bounds = array<i64: 1, 128>}]} {
    %c0 = arith.constant 0 : index
    %c0_0 = arith.constant 0 : index
    %0 = vector.load %arg1[%c0, %c0_0] : memref<4x128xf32, #tpu.memory_space<vmem>>, vector<4x128xf32>
    %c0_1 = arith.constant 0 : index
    %c0_2 = arith.constant 0 : index
    %1 = vector.load %arg2[%c0_1, %c0_2] : memref<64x4xf32, #tpu.memory_space<vmem>>, vector<64x4xf32>
    %2 = vector.extract_strided_slice %1 {offsets = [0, 0], sizes = [64, 1], strides = [1, 1]} : vector<64x4xf32> to vector<64x1xf32>
    %3 = vector.extract_strided_slice %0 {offsets = [0, 0], sizes = [1, 128], strides = [1, 1]} : vector<4x128xf32> to vector<1x128xf32>
    %4 = vector.broadcast %2 : vector<64x1xf32> to vector<64x128xf32>
    %5 = vector.broadcast %3 : vector<1x128xf32> to vector<64x128xf32>
    %6 = arith.mulf %4, %5 : vector<64x128xf32>
    %7 = vector.extract_strided_slice %1 {offsets = [0, 1], sizes = [64, 1], strides = [1, 1]} : vector<64x4xf32> to vector<64x1xf32>
    %8 = vector.extract_strided_slice %0 {offsets = [1, 0], sizes = [1, 128], strides = [1, 1]} : vector<4x128xf32> to vector<1x128xf32>
    %9 = vector.broadcast %7 : vector<64x1xf32> to vector<64x128xf32>
    %10 = vector.broadcast %8 : vector<1x128xf32> to vector<64x128xf32>
    %11 = arith.mulf %9, %10 : vector<64x128xf32>
    %12 = arith.addf %6, %11 : vector<64x128xf32>
    %13 = vector.extract_strided_slice %1 {offsets = [0, 2], sizes = [64, 1], strides = [1, 1]} : vector<64x4xf32> to vector<64x1xf32>
    %14 = vector.extract_strided_slice %0 {offsets = [2, 0], sizes = [1, 128], strides = [1, 1]} : vector<4x128xf32> to vector<1x128xf32>
    %15 = vector.broadcast %13 : vector<64x1xf32> to vector<64x128xf32>
    %16 = vector.broadcast %14 : vector<1x128xf32> to vector<64x128xf32>
    %17 = arith.mulf %15, %16 : vector<64x128xf32>
    %18 = arith.addf %12, %17 : vector<64x128xf32>
    %19 = vector.extract_strided_slice %1 {offsets = [0, 3], sizes = [64, 1], strides = [1, 1]} : vector<64x4xf32> to vector<64x1xf32>
    %20 = vector.extract_strided_slice %0 {offsets = [3, 0], sizes = [1, 128], strides = [1, 1]} : vector<4x128xf32> to vector<1x128xf32>
    %21 = vector.broadcast %19 : vector<64x1xf32> to vector<64x128xf32>
    %22 = vector.broadcast %20 : vector<1x128xf32> to vector<64x128xf32>
    %23 = arith.mulf %21, %22 : vector<64x128xf32>
    %24 = arith.addf %18, %23 : vector<64x128xf32>
    %c0_3 = arith.constant 0 : index
    %c0_4 = arith.constant 0 : index
    %25 = vector.load %arg3[%c0_3, %c0_4] : memref<64x1xf32, #tpu.memory_space<vmem>>, vector<64x1xf32>
    %26 = vector.broadcast %25 : vector<64x1xf32> to vector<64x128xf32>
    %27 = arith.addf %24, %26 : vector<64x128xf32>
    %cst = arith.constant 0.000000e+00 : f32
    %28 = vector.broadcast %cst : f32 to vector<64x128xf32>
    %29 = arith.maximumf %27, %28 : vector<64x128xf32>
    %c0_5 = arith.constant 0 : index
    %c0_6 = arith.constant 0 : index
    %30 = vector.load %arg4[%c0_5, %c0_6] : memref<64x1xf32, #tpu.memory_space<vmem>>, vector<64x1xf32>
    %31 = vector.broadcast %30 : vector<64x1xf32> to vector<64x128xf32>
    %32 = arith.mulf %31, %29 : vector<64x128xf32>
    %cst_7 = arith.constant dense<0.000000e+00> : vector<128xf32>
    %33 = vector.multi_reduction <add>, %32, %cst_7 [0] : vector<64x128xf32> to vector<128xf32>
    %34 = vector.shape_cast %33 : vector<128xf32> to vector<1x128xf32>
    %c0_8 = arith.constant 0 : index
    %c0_9 = arith.constant 0 : index
    %35 = memref.load %arg5[%c0_8, %c0_9] : memref<1x1xf32, #tpu.memory_space<smem>>
    %36 = vector.broadcast %35 : f32 to vector<1x128xf32>
    %37 = arith.addf %34, %36 : vector<1x128xf32>
    %c0_10 = arith.constant 0 : index
    %c0_11 = arith.constant 0 : index
    %38 = vector.load %arg6[%c0_10, %c0_11] : memref<1x128xf32, #tpu.memory_space<vmem>>, vector<1x128xf32>
    tpu.vector_store %arg6[%c0_10, %c0_11], %37 {strides = array<i32>} : memref<1x128xf32, #tpu.memory_space<vmem>>, vector<1x128xf32>,
    return
  }
  func.func @transform_0(%arg0: i32) -> (i32, i32) {
    %c0_i32 = arith.constant 0 : i32
    %c0_i32_0 = arith.constant 0 : i32
    return %c0_i32, %arg0 : i32, i32
  }
  func.func @transform_1(%arg0: i32) -> (i32, i32) {
    %c0_i32 = arith.constant 0 : i32
    %c0_i32_0 = arith.constant 0 : i32
    %c0_i32_1 = arith.constant 0 : i32
    return %c0_i32, %c0_i32_0 : i32, i32
  }
  func.func @transform_2(%arg0: i32) -> (i32, i32) {
    %c0_i32 = arith.constant 0 : i32
    %c0_i32_0 = arith.constant 0 : i32
    %c0_i32_1 = arith.constant 0 : i32
    return %c0_i32, %c0_i32_0 : i32, i32
  }
  func.func @transform_3(%arg0: i32) -> (i32, i32) {
    %c0_i32 = arith.constant 0 : i32
    %c0_i32_0 = arith.constant 0 : i32
    %c0_i32_1 = arith.constant 0 : i32
    return %c0_i32, %c0_i32_0 : i32, i32
  }
  func.func @transform_4(%arg0: i32) -> (i32, i32) {
    %c0_i32 = arith.constant 0 : i32
    %c0_i32_0 = arith.constant 0 : i32
    %c0_i32_1 = arith.constant 0 : i32
    return %c0_i32, %c0_i32_0 : i32, i32
  }
  func.func @transform_5(%arg0: i32) -> (i32, i32) {
    %c0_i32 = arith.constant 0 : i32
    %c0_i32_0 = arith.constant 0 : i32
    return %c0_i32, %arg0 : i32, i32
  }
}

</mosaic_0001>

<llo_original>
// kernel: tpu_custom_call.1
$region0: #{tpu_custom_call.1}
  #allocation0 [shape = 'u32[]', space=smem, size = 0x4, offset = 0x4, fixed_abs, tag = 'smem constant byte address 0x4 - core index']
  #allocation1 [shape = 'u32[144,128]{1,0:T(1,128)}', space=vmem, size = 0x12000, scoped, tag = 'internal scratch']
  #allocation2 [shape = 'f32[1,1]{1,0:T(1,128)S(6)}', space=smem, size = 0x200, scoped, tag = 'scoped memory for tpu_custom_call.1']
  %s0 = inlined_call_operand.vmem [shape: f32[4,128], index: 0, kind: input, shape index: {}]
  %s1 = inlined_call_operand.vmem [shape: f32[64,4], index: 1, kind: input, shape index: {}]
  %s2 = inlined_call_operand.vmem [shape: f32[64,1], index: 2, kind: input, shape index: {}]
  %s3 = inlined_call_operand.vmem [shape: f32[64,1], index: 3, kind: input, shape index: {}]
  %s4 = inlined_call_operand.<no memory space> [shape: f32[1,1], index: 4, kind: input, shape index: {}]
  %s5 = inlined_call_operand.hbm [shape: f32[1,128], index: 5, kind: output, shape index: {}]
  %s6 = sld [smem:[#allocation0]]
  $region30: #{tpu_custom_call.1} parent=0
    _
  %s8 = ssub.s32 1, %s6
  %s9 = scalar_select 0, %s8, %s6
  %10 = sst [smem:[#allocation2]] %s4
  $region1: #{tpu_custom_call.1} parent=0
    #allocation3 [shape = 'u8[512]{0}', space=vmem, size = 0x400, scoped, tag = 'output window, operand 0, single buffered']
    #allocation4 [shape = 's32[1]{0}', space=sflag, size = 0x4, scoped, tag = 'scoped memory for tpu_custom_call.1']
    %11 = vsyncpa [#allocation4], 0
    // Predicated region
    $region2: #{tpu_custom_call.1} parent=1 // pred_check
      _
    $region3: #{tpu_custom_call.1} parent=1 // pred_check_branch
      %13 = sbr.rel (0) target = $region5
    $region4: #{tpu_custom_call.1} parent=1 // pred_region
      _
    $region5: #{tpu_custom_call.1} parent=1 // pred_fallthru
      _
    // Predicated region
    $region6: #{tpu_custom_call.1} parent=1 // pred_check
      _
    $region7: #{tpu_custom_call.1} parent=1 // pred_check_branch
      %15 = sbr.rel (0) target = $region9
    $region8: #{tpu_custom_call.1} parent=1 // pred_region
      _
    $region9: #{tpu_custom_call.1} parent=1 // pred_fallthru
      _
    // Predicated region
    $region10: #{tpu_custom_call.1} parent=1 // pred_check
      _
    $region11: #{tpu_custom_call.1} parent=1 // pred_check_branch
      %17 = sbr.rel (0) target = $region13
    $region12: #{tpu_custom_call.1} parent=1 // pred_region
      _
    $region13: #{tpu_custom_call.1} parent=1 // pred_fallthru
      _
    // Predicated region
    $region14: #{tpu_custom_call.1} parent=1 // pred_check
      _
    $region15: #{tpu_custom_call.1} parent=1 // pred_check_branch
      %19 = sbr.rel (0) target = $region17
    $region16: #{tpu_custom_call.1} parent=1 // pred_region
      _
    $region17: #{tpu_custom_call.1} parent=1 // pred_fallthru
      _
    // Predicated region
    $region18: #{tpu_custom_call.1} parent=1 // pred_check
      _
    $region19: #{tpu_custom_call.1} parent=1 // pred_check_branch
      %21 = sbr.rel (0) target = $region21
    $region20: #{tpu_custom_call.1} parent=1 // pred_region
      _
    $region21: #{tpu_custom_call.1} parent=1 // pred_fallthru
      _
    %v22 = vld [vmem:[%s0] sm:$0xf]
    %v23 = vld [vmem:[%s1] sm:$0xff]
    %v24 = vld [vmem:[%s1 + $0x8] sm:$0xff]
    %v25 = vld [vmem:[%s1 + $0x10] sm:$0xff]
    %v26 = vld [vmem:[%s1 + $0x18] sm:$0xff]
    %v27 = vld [vmem:[%s1 + $0x20] sm:$0xff]
    %v28 = vld [vmem:[%s1 + $0x28] sm:$0xff]
    %v29 = vld [vmem:[%s1 + $0x30] sm:$0xff]
    %v30 = vld [vmem:[%s1 + $0x38] sm:$0xff]
    %32 = vset.pattern.permute.xlu0 0
    %33 = vperm.xlu0 %32, %v23
    %v34 = vpop.permute.xlu0 %33
    %37 = vset.pattern.permute.xlu0 0
    %38 = vperm.xlu0 %37, %v24
    %v39 = vpop.permute.xlu0 %38
    %42 = vset.pattern.permute.xlu0 0
    %43 = vperm.xlu0 %42, %v25
    %v44 = vpop.permute.xlu0 %43
    %47 = vset.pattern.permute.xlu0 0
    %48 = vperm.xlu0 %47, %v26
    %v49 = vpop.permute.xlu0 %48
    %52 = vset.pattern.permute.xlu0 0
    %53 = vperm.xlu0 %52, %v27
    %v54 = vpop.permute.xlu0 %53
    %57 = vset.pattern.permute.xlu0 0
    %58 = vperm.xlu0 %57, %v28
    %v59 = vpop.permute.xlu0 %58
    %62 = vset.pattern.permute.xlu0 0
    %63 = vperm.xlu0 %62, %v29
    %v64 = vpop.permute.xlu0 %63
    %67 = vset.pattern.permute.xlu0 0
    %68 = vperm.xlu0 %67, %v30
    %v69 = vpop.permute.xlu0 %68
    %v71 = vlaneseq
    %v72 = vshrl.u32 %v71, 7
    %v73 = vsub.s32 0, %v72
    %v74 = vrot.slane %v22, %v73
    %v75 = vmul.f32 %v34, %v74
    %v76 = vmul.f32 %v39, %v74
    %v77 = vmul.f32 %v44, %v74
    %v78 = vmul.f32 %v49, %v74
    %v79 = vmul.f32 %v54, %v74
    %v80 = vmul.f32 %v59, %v74
    %v81 = vmul.f32 %v64, %v74
    %v82 = vmul.f32 %v69, %v74
    %83 = vset.pattern.permute.xlu0 1
    %84 = vperm.xlu0 %83, %v23
    %v85 = vpop.permute.xlu0 %84
    %87 = vset.pattern.permute.xlu0 1
    %88 = vperm.xlu0 %87, %v24
    %v89 = vpop.permute.xlu0 %88
    %91 = vset.pattern.permute.xlu0 1
    %92 = vperm.xlu0 %91, %v25
    %v93 = vpop.permute.xlu0 %92
    %95 = vset.pattern.permute.xlu0 1
    %96 = vperm.xlu0 %95, %v26
    %v97 = vpop.permute.xlu0 %96
    %99 = vset.pattern.permute.xlu0 1
    %100 = vperm.xlu0 %99, %v27
    %v101 = vpop.permute.xlu0 %100
    %103 = vset.pattern.permute.xlu0 1
    %104 = vperm.xlu0 %103, %v28
    %v105 = vpop.permute.xlu0 %104
    %107 = vset.pattern.permute.xlu0 1
    %108 = vperm.xlu0 %107, %v29
    %v109 = vpop.permute.xlu0 %108
    %111 = vset.pattern.permute.xlu0 1
    %112 = vperm.xlu0 %111, %v30
    %v113 = vpop.permute.xlu0 %112
    %v115 = vlaneseq
    %v116 = vshrl.u32 %v115, 7
    %v117 = vsub.s32 1, %v116
    %v118 = vrot.slane %v22, %v117
    %v119 = vmul.f32 %v85, %v118
    %v120 = vmul.f32 %v89, %v118
    %v121 = vmul.f32 %v93, %v118
    %v122 = vmul.f32 %v97, %v118
    %v123 = vmul.f32 %v101, %v118
    %v124 = vmul.f32 %v105, %v118
    %v125 = vmul.f32 %v109, %v118
    %v126 = vmul.f32 %v113, %v118
    %v127 = vadd.f32 %v75, %v119
    %v128 = vadd.f32 %v76, %v120
    %v129 = vadd.f32 %v77, %v121
    %v130 = vadd.f32 %v78, %v122
    %v131 = vadd.f32 %v79, %v123
    %v132 = vadd.f32 %v80, %v124
    %v133 = vadd.f32 %v81, %v125
    %v134 = vadd.f32 %v82, %v126
    %135 = vset.pattern.permute.xlu0 2
    %136 = vperm.xlu0 %135, %v23
    %v137 = vpop.permute.xlu0 %136
    %139 = vset.pattern.permute.xlu0 2
    %140 = vperm.xlu0 %139, %v24
    %v141 = vpop.permute.xlu0 %140
    %143 = vset.pattern.permute.xlu0 2
    %144 = vperm.xlu0 %143, %v25
    %v145 = vpop.permute.xlu0 %144
    %147 = vset.pattern.permute.xlu0 2
    %148 = vperm.xlu0 %147, %v26
    %v149 = vpop.permute.xlu0 %148
    %151 = vset.pattern.permute.xlu0 2
    %152 = vperm.xlu0 %151, %v27
    %v153 = vpop.permute.xlu0 %152
    %155 = vset.pattern.permute.xlu0 2
    %156 = vperm.xlu0 %155, %v28
    %v157 = vpop.permute.xlu0 %156
    %159 = vset.pattern.permute.xlu0 2
    %160 = vperm.xlu0 %159, %v29
    %v161 = vpop.permute.xlu0 %160
    %163 = vset.pattern.permute.xlu0 2
    %164 = vperm.xlu0 %163, %v30
    %v165 = vpop.permute.xlu0 %164
    %v167 = vlaneseq
    %v168 = vshrl.u32 %v167, 7
    %v169 = vsub.s32 2, %v168
    %v170 = vrot.slane %v22, %v169
    %v171 = vmul.f32 %v137, %v170
    %v172 = vmul.f32 %v141, %v170
    %v173 = vmul.f32 %v145, %v170
    %v174 = vmul.f32 %v149, %v170
    %v175 = vmul.f32 %v153, %v170
    %v176 = vmul.f32 %v157, %v170
    %v177 = vmul.f32 %v161, %v170
    %v178 = vmul.f32 %v165, %v170
    %v179 = vadd.f32 %v127, %v171
    %v180 = vadd.f32 %v128, %v172
    %v181 = vadd.f32 %v129, %v173
    %v182 = vadd.f32 %v130, %v174
    %v183 = vadd.f32 %v131, %v175
    %v184 = vadd.f32 %v132, %v176
    %v185 = vadd.f32 %v133, %v177
    %v186 = vadd.f32 %v134, %v178
    %187 = vset.pattern.permute.xlu0 3
    %188 = vperm.xlu0 %187, %v23
    %v189 = vpop.permute.xlu0 %188
    %191 = vset.pattern.permute.xlu0 3
    %192 = vperm.xlu0 %191, %v24
    %v193 = vpop.permute.xlu0 %192
    %195 = vset.pattern.permute.xlu0 3
    %196 = vperm.xlu0 %195, %v25
    %v197 = vpop.permute.xlu0 %196
    %199 = vset.pattern.permute.xlu0 3
    %200 = vperm.xlu0 %199, %v26
    %v201 = vpop.permute.xlu0 %200
    %203 = vset.pattern.permute.xlu0 3
    %204 = vperm.xlu0 %203, %v27
    %v205 = vpop.permute.xlu0 %204
    %207 = vset.pattern.permute.xlu0 3
    %208 = vperm.xlu0 %207, %v28
    %v209 = vpop.permute.xlu0 %208
    %211 = vset.pattern.permute.xlu0 3
    %212 = vperm.xlu0 %211, %v29
    %v213 = vpop.permute.xlu0 %212
    %215 = vset.pattern.permute.xlu0 3
    %216 = vperm.xlu0 %215, %v30
    %v217 = vpop.permute.xlu0 %216
    %v219 = vlaneseq
    %v220 = vshrl.u32 %v219, 7
    %v221 = vsub.s32 3, %v220
    %v222 = vrot.slane %v22, %v221
    %v223 = vmul.f32 %v189, %v222
    %v224 = vmul.f32 %v193, %v222
    %v225 = vmul.f32 %v197, %v222
    %v226 = vmul.f32 %v201, %v222
    %v227 = vmul.f32 %v205, %v222
    %v228 = vmul.f32 %v209, %v222
    %v229 = vmul.f32 %v213, %v222
    %v230 = vmul.f32 %v217, %v222
    %v231 = vadd.f32 %v179, %v223
    %v232 = vadd.f32 %v180, %v224
    %v233 = vadd.f32 %v181, %v225
    %v234 = vadd.f32 %v182, %v226
    %v235 = vadd.f32 %v183, %v227
    %v236 = vadd.f32 %v184, %v228
    %v237 = vadd.f32 %v185, %v229
    %v238 = vadd.f32 %v186, %v230
    %v239 = vld [vmem:[%s2] sm:$0xff]
    %v240 = vld [vmem:[%s2 + $0x8] sm:$0xff]
    %v241 = vld [vmem:[%s2 + $0x10] sm:$0xff]
    %v242 = vld [vmem:[%s2 + $0x18] sm:$0xff]
    %v243 = vld [vmem:[%s2 + $0x20] sm:$0xff]
    %v244 = vld [vmem:[%s2 + $0x28] sm:$0xff]
    %v245 = vld [vmem:[%s2 + $0x30] sm:$0xff]
    %v246 = vld [vmem:[%s2 + $0x38] sm:$0xff]
    %248 = vset.pattern.permute.xlu0 0
    %249 = vperm.xlu0 %248, %v239
    %v250 = vpop.permute.xlu0 %249
    %253 = vset.pattern.permute.xlu0 0
    %254 = vperm.xlu0 %253, %v240
    %v255 = vpop.permute.xlu0 %254
    %258 = vset.pattern.permute.xlu0 0
    %259 = vperm.xlu0 %258, %v241
    %v260 = vpop.permute.xlu0 %259
    %263 = vset.pattern.permute.xlu0 0
    %264 = vperm.xlu0 %263, %v242
    %v265 = vpop.permute.xlu0 %264
    %268 = vset.pattern.permute.xlu0 0
    %269 = vperm.xlu0 %268, %v243
    %v270 = vpop.permute.xlu0 %269
    %273 = vset.pattern.permute.xlu0 0
    %274 = vperm.xlu0 %273, %v244
    %v275 = vpop.permute.xlu0 %274
    %278 = vset.pattern.permute.xlu0 0
    %279 = vperm.xlu0 %278, %v245
    %v280 = vpop.permute.xlu0 %279
    %283 = vset.pattern.permute.xlu0 0
    %284 = vperm.xlu0 %283, %v246
    %v285 = vpop.permute.xlu0 %284
    %v287 = vadd.f32 %v231, %v250
    %v288 = vadd.f32 %v232, %v255
    %v289 = vadd.f32 %v233, %v260
    %v290 = vadd.f32 %v234, %v265
    %v291 = vadd.f32 %v235, %v270
    %v292 = vadd.f32 %v236, %v275
    %v293 = vadd.f32 %v237, %v280
    %v294 = vadd.f32 %v238, %v285
    %v295 = vmax.f32 %v287, 0.0
    %v296 = vmax.f32 %v288, 0.0
    %v297 = vmax.f32 %v289, 0.0
    %v298 = vmax.f32 %v290, 0.0
    %v299 = vmax.f32 %v291, 0.0
    %v300 = vmax.f32 %v292, 0.0
    %v301 = vmax.f32 %v293, 0.0
    %v302 = vmax.f32 %v294, 0.0
    %v303 = vld [vmem:[%s3] sm:$0xff]
    %v304 = vld [vmem:[%s3 + $0x8] sm:$0xff]
    %v305 = vld [vmem:[%s3 + $0x10] sm:$0xff]
    %v306 = vld [vmem:[%s3 + $0x18] sm:$0xff]
    %v307 = vld [vmem:[%s3 + $0x20] sm:$0xff]
    %v308 = vld [vmem:[%s3 + $0x28] sm:$0xff]
    %v309 = vld [vmem:[%s3 + $0x30] sm:$0xff]
    %v310 = vld [vmem:[%s3 + $0x38] sm:$0xff]
    %312 = vset.pattern.permute.xlu0 0
    %313 = vperm.xlu0 %312, %v303
    %v314 = vpop.permute.xlu0 %313
    %317 = vset.pattern.permute.xlu0 0
    %318 = vperm.xlu0 %317, %v304
    %v319 = vpop.permute.xlu0 %318
    %322 = vset.pattern.permute.xlu0 0
    %323 = vperm.xlu0 %322, %v305
    %v324 = vpop.permute.xlu0 %323
    %327 = vset.pattern.permute.xlu0 0
    %328 = vperm.xlu0 %327, %v306
    %v329 = vpop.permute.xlu0 %328
    %332 = vset.pattern.permute.xlu0 0
    %333 = vperm.xlu0 %332, %v307
    %v334 = vpop.permute.xlu0 %333
    %337 = vset.pattern.permute.xlu0 0
    %338 = vperm.xlu0 %337, %v308
    %v339 = vpop.permute.xlu0 %338
    %342 = vset.pattern.permute.xlu0 0
    %343 = vperm.xlu0 %342, %v309
    %v344 = vpop.permute.xlu0 %343
    %347 = vset.pattern.permute.xlu0 0
    %348 = vperm.xlu0 %347, %v310
    %v349 = vpop.permute.xlu0 %348
    %v351 = vmul.f32 %v314, %v295
    %v352 = vmul.f32 %v319, %v296
    %v353 = vmul.f32 %v324, %v297
    %v354 = vmul.f32 %v329, %v298
    %v355 = vmul.f32 %v334, %v299
    %v356 = vmul.f32 %v339, %v300
    %v357 = vmul.f32 %v344, %v301
    %v358 = vmul.f32 %v349, %v302
    %v359 = vadd.f32 %v351, %v352
    %v360 = vadd.f32 %v359, %v353
    %v361 = vadd.f32 %v360, %v354
    %v362 = vadd.f32 %v361, %v355
    %v363 = vadd.f32 %v362, %v356
    %v364 = vadd.f32 %v363, %v357
    %v365 = vadd.f32 %v364, %v358
    %v366 = vrot.slane %v365, 4
    %v367 = vadd.f32 %v365, %v366
    %v368 = vrot.slane %v367, 2
    %v369 = vadd.f32 %v367, %v368
    %v370 = vrot.slane %v369, 1
    %v371 = vadd.f32 %v369, %v370
    %s372 = sld [smem:[#allocation2]]
    %v373 = vstv %s372
    %v374 = vadd.f32 %v371, %v373
    %375 = vst [vmem:[#allocation3] sm:$0x1] %v374
    // Predicated region
    $region22: #{tpu_custom_call.1} parent=1 // pred_check
      _
    $region23: #{tpu_custom_call.1} parent=1 // pred_check_branch
      %377 = sbr.rel (0) target = $region25
    $region24: #{tpu_custom_call.1} parent=1 // pred_region
      %s379 = ssub.s32 16, 16
      %380 = vsyncadd [#allocation4], %s379
      %s382 = sshll.u32 [#allocation3], 4
      %s383 = int_to_ptr.vmem [resolvable:$true] %s382
      %385 = dma.vmem_to_hbm [thread:$0]  %s383, 16, %s5, [#allocation4]
    $region25: #{tpu_custom_call.1} parent=1 // pred_fallthru
      _
    // Predicated region
    $region26: #{tpu_custom_call.1} parent=1 // pred_check
      _
    $region27: #{tpu_custom_call.1} parent=1 // pred_check_branch
      %387 = sbr.rel (0) target = $region29
    $region28: #{tpu_custom_call.1} parent=1 // pred_region
      %388 = dma.done [#allocation4], 16
    $region29: #{tpu_custom_call.1} parent=1 // pred_fallthru
      _
    %389 = vsyncpa [#allocation4], 1

</llo_original>
